<compile_context>
chip_gen: v5e
topology: v5e:2x2
jax: 0.10.0
libtpu: 0.0.40
codegen_flags: <defaults>
</compile_context>

<pallas_src>
import functools
import math

import jax
import jax.numpy as jnp
from jax.experimental import pallas as pl
from jax.experimental.pallas import tpu as pltpu


_LANE = 128     # lane width: last dim of every block padded to a multiple of this
_SUBLANE = 8    # sublane width: batch padded to a multiple of this


def _round_up(x, m):
    return ((x + m - 1) // m) * m


# ---------------------------------------------------------------------------
# Fused Pallas kernel: whole MLP in one call, activations resident in VMEM.
# ---------------------------------------------------------------------------
def _mlp_kernel(*refs, n_layers: int, activation: str, last_has_activation: bool):
    # refs = (x_ref, w0_ref, b0_ref, w1_ref, b1_ref, ..., o_ref)
    x_ref = refs[0]
    o_ref = refs[-1]
    wb = refs[1:-1]

    h = x_ref[...]  # (B_pad, D0_pad) f32
    for i in range(n_layers):  # static unrolled loop over layers
        w = wb[2 * i][...]       # (Din_pad, Dout_pad)
        b = wb[2 * i + 1][...]   # (1, Dout_pad), broadcasts over batch
        h = jnp.dot(h, w, preferred_element_type=jnp.float32) + b
        if (i < n_layers - 1) or last_has_activation:
            if activation == "relu":
                h = jnp.maximum(h, 0.0)
            else:
                # TODO(synk): only relu/tanh supported in-kernel; arbitrary
                # PyTorch activation callables have no generic Pallas mapping.
                h = jnp.tanh(h)  # EUP op, fused behind the MXU
        # Note: padded rows/columns stay zero through matmul, bias-add (bias
        # padded with zeros) and relu/tanh(0)=0, so padding is self-consistent.
    o_ref[...] = h.astype(o_ref.dtype)


@functools.partial(
    jax.jit,
    static_argnames=("activation", "last_has_activation", "true_out_dim"),
)
def fused_mlp_forward(x, weights_pad, biases_pad, *, activation,
                      last_has_activation, true_out_dim):
    """x: (B, D0_true). weights_pad[i]: (Din_pad, Dout_pad). biases_pad[i]: (1, Dout_pad)."""
    B, D0 = x.shape
    n_layers = len(weights_pad)
    B_pad = _round_up(max(B, _SUBLANE), _SUBLANE)
    D0_pad = weights_pad[0].shape[0]
    Dout_pad = weights_pad[-1].shape[1]

    # Zero-pad the input once (cheap XLA op inside the jit).
    x_pad = jnp.zeros((B_pad, D0_pad), dtype=x.dtype).at[:B, :D0].set(x)

    flat_params = []
    for w, b in zip(weights_pad, biases_pad):
        flat_params.append(w)
        flat_params.append(b)

    kernel = functools.partial(
        _mlp_kernel,
        n_layers=n_layers,
        activation=activation,
        last_has_activation=last_has_activation,
    )

    # Whole problem fits in VMEM at these sizes -> grid-less call, every array
    # is a single lane-dense VMEM block; intermediates never touch HBM.
    vmem_spec = pl.BlockSpec(memory_space=pltpu.MemorySpace.VMEM)
    out_pad = pl.pallas_call(
        kernel,
        out_shape=jax.ShapeDtypeStruct((B_pad, Dout_pad), x.dtype),
        in_specs=[vmem_spec] * (1 + len(flat_params)),
        out_specs=vmem_spec,
    )(x_pad, *flat_params)

    # Slice back to the true (unpadded) batch / output width.
    return out_pad[:B, :true_out_dim]


# ---------------------------------------------------------------------------
# FeatureExtractor in JAX (parameters initialized deterministically in-script)
# ---------------------------------------------------------------------------
class FeatureExtractor:
    def __init__(self, shape, activation="relu", key=None):
        """shape: list of layer widths; activation: "relu" or non-relu (tanh)."""
        assert len(shape) >= 2
        self.shape = list(shape)
        self.out_features = shape[-2]
        self.activation = activation
        self.extract_feature_mode = False

        if key is None:
            key = jax.random.PRNGKey(0)

        self.weights = []       # unpadded (in, out) -- reference / true params
        self.biases = []        # unpadded (out,)
        self.weights_pad = []   # lane-dense zero-padded (in_pad, out_pad)
        self.biases_pad = []    # (1, out_pad)
        for i in range(len(shape) - 1):
            fan_in, fan_out = shape[i], shape[i + 1]
            key, wk, bk = jax.random.split(key, 3)
            if activation == "relu":
                std = math.sqrt(2.0 / fan_in)              # kaiming_normal_
            else:
                std = math.sqrt(2.0 / (fan_in + fan_out))  # xavier_normal_
            w = std * jax.random.normal(wk, (fan_in, fan_out), dtype=jnp.float32)
            # nn.Linear default bias init: U(-1/sqrt(fan_in), 1/sqrt(fan_in))
            bound = 1.0 / math.sqrt(fan_in)
            b = jax.random.uniform(
                bk, (fan_out,), minval=-bound, maxval=bound, dtype=jnp.float32
            )
            self.weights.append(w)
            self.biases.append(b)

            in_pad = _round_up(fan_in, _LANE)
            out_pad = _round_up(fan_out, _LANE)
            w_pad = (
                jnp.zeros((in_pad, out_pad), jnp.float32)
                .at[:fan_in, :fan_out]
                .set(w)
            )
            b_pad = jnp.zeros((1, out_pad), jnp.float32).at[0, :fan_out].set(b)
            self.weights_pad.append(w_pad)
            self.biases_pad.append(b_pad)

    def set_extract_feature_mode(self, status: bool):
        self.extract_feature_mode = status

    def get_out_features(self):
        return self.out_features

    def __call__(self, x):
        n_layers = len(self.weights_pad)
        if self.extract_feature_mode:
            n_run = n_layers - 1
            if n_run == 0:
                return x
            return fused_mlp_forward(
                x,
                tuple(self.weights_pad[:n_run]),
                tuple(self.biases_pad[:n_run]),
                activation=self.activation,
                last_has_activation=True,
                true_out_dim=self.shape[-2],
            )
        return fused_mlp_forward(
            x,
            tuple(self.weights_pad),
            tuple(self.biases_pad),
            activation=self.activation,
            last_has_activation=False,
            true_out_dim=self.shape[-1],
        )


# ---------------------------------------------------------------------------
# Pure-JAX reference for correctness checking (uses unpadded params)
# ---------------------------------------------------------------------------
def reference_forward(model: FeatureExtractor, x):
    for i in range(len(model.weights) - 1):
        x = x @ model.weights[i] + model.biases[i]
        x = jnp.maximum(x, 0.0) if model.activation == "relu" else jnp.tanh(x)
    if model.extract_feature_mode:
        return x
    return x @ model.weights[-1] + model.biases[-1]


if __name__ == "__main__":
    key = jax.random.PRNGKey(0)
    key, xk, pk1, pk2 = jax.random.split(key, 4)

    batch = 8
    shape = [32, 64, 48, 16]  # layer widths: in=32, hidden 64, 48, out 16
    x = jax.random.normal(xk, (batch, shape[0]), dtype=jnp.float32)

    # --- relu path (kaiming init), full forward ---
    model = FeatureExtractor(shape, activation="relu", key=pk1)
    out = jax.block_until_ready(model(x))
    ref = reference_forward(model, x)
    assert out.shape == (batch, shape[-1]), out.shape
    assert jnp.allclose(out, ref, atol=1e-3, rtol=1e-3), "relu forward mismatch"

    # --- extract_feature_mode (hidden layers only) ---
    model.set_extract_feature_mode(True)
    feat = jax.block_until_ready(model(x))
    ref_feat = reference_forward(model, x)
    assert feat.shape == (batch, model.get_out_features()), feat.shape
    assert jnp.allclose(feat, ref_feat, atol=1e-3, rtol=1e-3), "feature-mode mismatch"
    model.set_extract_feature_mode(False)

    # --- non-relu path (xavier init, tanh fused in-kernel) ---
    model_t = FeatureExtractor(shape, activation="tanh", key=pk2)
    out_t = jax.block_until_ready(model_t(x))
    ref_t = reference_forward(model_t, x)
    assert out_t.shape == (batch, shape[-1]), out_t.shape
    assert jnp.allclose(out_t, ref_t, atol=1e-3, rtol=1e-3), "tanh forward mismatch"

    print("KERNEL_OK")
</pallas_src>

<mosaic_0001>
module attributes {stable_mosaic.version = 11 : i64} {
  func.func @_mlp_kernel(%arg0: memref<8x128xf32, #tpu.memory_space<vmem>>, %arg1: memref<128x128xf32, #tpu.memory_space<vmem>>, %arg2: memref<1x128xf32, #tpu.memory_space<vmem>>, %arg3: memref<128x128xf32, #tpu.memory_space<vmem>>, %arg4: memref<1x128xf32, #tpu.memory_space<vmem>>, %arg5: memref<128x128xf32, #tpu.memory_space<vmem>>, %arg6: memref<1x128xf32, #tpu.memory_space<vmem>>, %arg7: memref<8x128xf32, #tpu.memory_space<vmem>>) attributes {dimension_semantics = [], scalar_prefetch = 0 : i64, scratch_operands = 0 : i64, tpu.core_type = #tpu.core_type<tc>} {
    %c0 = arith.constant 0 : index
    %c0_0 = arith.constant 0 : index
    %0 = vector.load %arg0[%c0, %c0_0] : memref<8x128xf32, #tpu.memory_space<vmem>>, vector<8x128xf32>
    %c0_1 = arith.constant 0 : index
    %c0_2 = arith.constant 0 : index
    %1 = vector.load %arg1[%c0_1, %c0_2] : memref<128x128xf32, #tpu.memory_space<vmem>>, vector<128x128xf32>
    %c0_3 = arith.constant 0 : index
    %c0_4 = arith.constant 0 : index
    %2 = vector.load %arg2[%c0_3, %c0_4] : memref<1x128xf32, #tpu.memory_space<vmem>>, vector<1x128xf32>
    %cst = arith.constant dense<0.000000e+00> : vector<8x128xf32>
    %3 = tpu.matmul %0, %1, %cst {dimension_numbers = #tpu.dot_dimension_numbers<[1], [0], [0], [1], [0, 0, 1, 1], [], []>} : vector<8x128xf32>, vector<128x128xf32>, vector<8x128xf32> -> vector<8x128xf32>
    %4 = vector.broadcast %2 : vector<1x128xf32> to vector<8x128xf32>
    %5 = arith.addf %3, %4 : vector<8x128xf32>
    %cst_5 = arith.constant 0.000000e+00 : f32
    %6 = vector.broadcast %cst_5 : f32 to vector<8x128xf32>
    %7 = arith.maximumf %5, %6 : vector<8x128xf32>
    %c0_6 = arith.constant 0 : index
    %c0_7 = arith.constant 0 : index
    %8 = vector.load %arg3[%c0_6, %c0_7] : memref<128x128xf32, #tpu.memory_space<vmem>>, vector<128x128xf32>
    %c0_8 = arith.constant 0 : index
    %c0_9 = arith.constant 0 : index
    %9 = vector.load %arg4[%c0_8, %c0_9] : memref<1x128xf32, #tpu.memory_space<vmem>>, vector<1x128xf32>
    %cst_10 = arith.constant dense<0.000000e+00> : vector<8x128xf32>
    %10 = tpu.matmul %7, %8, %cst_10 {dimension_numbers = #tpu.dot_dimension_numbers<[1], [0], [0], [1], [0, 0, 1, 1], [], []>} : vector<8x128xf32>, vector<128x128xf32>, vector<8x128xf32> -> vector<8x128xf32>
    %11 = vector.broadcast %9 : vector<1x128xf32> to vector<8x128xf32>
    %12 = arith.addf %10, %11 : vector<8x128xf32>
    %cst_11 = arith.constant 0.000000e+00 : f32
    %13 = vector.broadcast %cst_11 : f32 to vector<8x128xf32>
    %14 = arith.maximumf %12, %13 : vector<8x128xf32>
    %c0_12 = arith.constant 0 : index
    %c0_13 = arith.constant 0 : index
    %15 = vector.load %arg5[%c0_12, %c0_13] : memref<128x128xf32, #tpu.memory_space<vmem>>, vector<128x128xf32>
    %c0_14 = arith.constant 0 : index
    %c0_15 = arith.constant 0 : index
    %16 = vector.load %arg6[%c0_14, %c0_15] : memref<1x128xf32, #tpu.memory_space<vmem>>, vector<1x128xf32>
    %cst_16 = arith.constant dense<0.000000e+00> : vector<8x128xf32>
    %17 = tpu.matmul %14, %15, %cst_16 {dimension_numbers = #tpu.dot_dimension_numbers<[1], [0], [0], [1], [0, 0, 1, 1], [], []>} : vector<8x128xf32>, vector<128x128xf32>, vector<8x128xf32> -> vector<8x128xf32>
    %18 = vector.broadcast %16 : vector<1x128xf32> to vector<8x128xf32>
    %19 = arith.addf %17, %18 : vector<8x128xf32>
    %c0_17 = arith.constant 0 : index
    %c0_18 = arith.constant 0 : index
    %20 = vector.load %arg7[%c0_17, %c0_18] : memref<8x128xf32, #tpu.memory_space<vmem>>, vector<8x128xf32>
    tpu.vector_store %arg7[%c0_17, %c0_18], %19 {strides = array<i32>} : memref<8x128xf32, #tpu.memory_space<vmem>>, vector<8x128xf32>,
    return
  }
}

</mosaic_0001>

<llo_original>
// kernel: fused_mlp_forward.1
$region0: #{fused_mlp_forward.1}
  #allocation0 [shape = 'u32[]', space=smem, size = 0x4, offset = 0x4, fixed_abs, tag = 'smem constant byte address 0x4 - core index']
  #allocation1 [shape = 'u32[72,128]{1,0:T(1,128)}', space=vmem, size = 0x9000, scoped, tag = 'internal scratch']
  %s0 = inlined_call_operand.vmem [shape: f32[8,128], index: 0, kind: input, shape index: {}]
  %s1 = inlined_call_operand.hbm [shape: f32[128,128], index: 1, kind: input, shape index: {}]
  %s2 = inlined_call_operand.vmem [shape: f32[1,128], index: 2, kind: input, shape index: {}]
  %s3 = inlined_call_operand.hbm [shape: f32[128,128], index: 3, kind: input, shape index: {}]
  %s4 = inlined_call_operand.vmem [shape: f32[1,128], index: 4, kind: input, shape index: {}]
  %s5 = inlined_call_operand.hbm [shape: f32[128,128], index: 5, kind: input, shape index: {}]
  %s6 = inlined_call_operand.vmem [shape: f32[1,128], index: 6, kind: input, shape index: {}]
  %s7 = inlined_call_operand.hbm [shape: f32[8,128], index: 7, kind: output, shape index: {}]
  %s8 = sld [smem:[#allocation0]]
  $region50: #{fused_mlp_forward.1} parent=0
    _
  %s10 = ssub.s32 1, %s8
  %s11 = scalar_select 0, %s10, %s8
  $region1: #{fused_mlp_forward.1} parent=0
    #allocation2 [shape = 'u8[65536]{0}', space=vmem, size = 0x10000, scoped, tag = 'input window, operand 1, single buffered']
    #allocation3 [shape = 's32[1]{0}', space=sflag, size = 0x4, scoped, tag = 'scoped memory for fused_mlp_forward.1']
    #allocation4 [shape = 's32[1]{0}', space=sflag, size = 0x4, scoped, tag = 'scoped memory for fused_mlp_forward.1']
    #allocation5 [shape = 'u8[65536]{0}', space=vmem, size = 0x10000, scoped, tag = 'input window, operand 3, single buffered']
    #allocation6 [shape = 's32[1]{0}', space=sflag, size = 0x4, scoped, tag = 'scoped memory for fused_mlp_forward.1']
    #allocation7 [shape = 'u8[65536]{0}', space=vmem, size = 0x10000, scoped, tag = 'input window, operand 5, single buffered']
    #allocation8 [shape = 'u8[4096]{0}', space=vmem, size = 0x1000, scoped, tag = 'output window, operand 0, single buffered']
    %12 = vsyncpa [#allocation3], 0
    %13 = vsyncpa [#allocation6], 0
    %14 = vsyncpa [#allocation4], 0
    // Predicated region
    $region2: #{fused_mlp_forward.1} parent=1 // pred_check
      _
    $region3: #{fused_mlp_forward.1} parent=1 // pred_check_branch
      %16 = sbr.rel (0) target = $region5
    $region4: #{fused_mlp_forward.1} parent=1 // pred_region
      _
    $region5: #{fused_mlp_forward.1} parent=1 // pred_fallthru
      _
    // Predicated region
    $region6: #{fused_mlp_forward.1} parent=1 // pred_check
      _
    $region7: #{fused_mlp_forward.1} parent=1 // pred_check_branch
      %18 = sbr.rel (0) target = $region9
    $region8: #{fused_mlp_forward.1} parent=1 // pred_region
      %20 = vsyncadd [#allocation3], 0
      %s21 = sshll.u32 %s1, 4
      %s22 = int_to_ptr.hbm [resolvable:$true] %s21
      %s23 = sshll.u32 [#allocation2], 4
      %s24 = int_to_ptr.vmem [resolvable:$true] %s23
      %29 = dma.hbm_to_vmem [thread:$0]  %s22, 2048, %s24, [#allocation3], 128, 128, 8
    $region9: #{fused_mlp_forward.1} parent=1 // pred_fallthru
      _
    // Predicated region
    $region10: #{fused_mlp_forward.1} parent=1 // pred_check
      _
    $region11: #{fused_mlp_forward.1} parent=1 // pred_check_branch
      %31 = sbr.rel (0) target = $region13
    $region12: #{fused_mlp_forward.1} parent=1 // pred_region
      _
    $region13: #{fused_mlp_forward.1} parent=1 // pred_fallthru
      _
    // Predicated region
    $region14: #{fused_mlp_forward.1} parent=1 // pred_check
      _
    $region15: #{fused_mlp_forward.1} parent=1 // pred_check_branch
      %33 = sbr.rel (0) target = $region17
    $region16: #{fused_mlp_forward.1} parent=1 // pred_region
      %35 = vsyncadd [#allocation6], 0
      %s36 = sshll.u32 %s3, 4
      %s37 = int_to_ptr.hbm [resolvable:$true] %s36
      %s38 = sshll.u32 [#allocation5], 4
      %s39 = int_to_ptr.vmem [resolvable:$true] %s38
      %44 = dma.hbm_to_vmem [thread:$0]  %s37, 2048, %s39, [#allocation6], 128, 128, 8
    $region17: #{fused_mlp_forward.1} parent=1 // pred_fallthru
      _
    // Predicated region
    $region18: #{fused_mlp_forward.1} parent=1 // pred_check
      _
    $region19: #{fused_mlp_forward.1} parent=1 // pred_check_branch
      %46 = sbr.rel (0) target = $region21
    $region20: #{fused_mlp_forward.1} parent=1 // pred_region
      _
    $region21: #{fused_mlp_forward.1} parent=1 // pred_fallthru
      _
    // Predicated region
    $region22: #{fused_mlp_forward.1} parent=1 // pred_check
      _
    $region23: #{fused_mlp_forward.1} parent=1 // pred_check_branch
      %48 = sbr.rel (0) target = $region25
    $region24: #{fused_mlp_forward.1} parent=1 // pred_region
      %50 = vsyncadd [#allocation6], 0
      %s51 = sshll.u32 %s5, 4
      %s52 = int_to_ptr.hbm [resolvable:$true] %s51
      %s53 = sshll.u32 [#allocation7], 4
      %s54 = int_to_ptr.vmem [resolvable:$true] %s53
      %59 = dma.hbm_to_vmem [thread:$0]  %s52, 2048, %s54, [#allocation6], 128, 128, 8
    $region25: #{fused_mlp_forward.1} parent=1 // pred_fallthru
      _
    // Predicated region
    $region26: #{fused_mlp_forward.1} parent=1 // pred_check
      _
    $region27: #{fused_mlp_forward.1} parent=1 // pred_check_branch
      %61 = sbr.rel (0) target = $region29
    $region28: #{fused_mlp_forward.1} parent=1 // pred_region
      _
    $region29: #{fused_mlp_forward.1} parent=1 // pred_fallthru
      _
    // Predicated region
    $region30: #{fused_mlp_forward.1} parent=1 // pred_check
      _
    $region31: #{fused_mlp_forward.1} parent=1 // pred_check_branch
      %63 = sbr.rel (0) target = $region33
    $region32: #{fused_mlp_forward.1} parent=1 // pred_region
      %65 = dma.done [#allocation3], 2048
    $region33: #{fused_mlp_forward.1} parent=1 // pred_fallthru
      _
    // Predicated region
    $region34: #{fused_mlp_forward.1} parent=1 // pred_check
      _
    $region35: #{fused_mlp_forward.1} parent=1 // pred_check_branch
      %67 = sbr.rel (0) target = $region37
    $region36: #{fused_mlp_forward.1} parent=1 // pred_region
      %69 = dma.done [#allocation6], 2048
    $region37: #{fused_mlp_forward.1} parent=1 // pred_fallthru
      _
    // Predicated region
    $region38: #{fused_mlp_forward.1} parent=1 // pred_check
      _
    $region39: #{fused_mlp_forward.1} parent=1 // pred_check_branch
      %71 = sbr.rel (0) target = $region41
    $region40: #{fused_mlp_forward.1} parent=1 // pred_region
      %73 = dma.done [#allocation6], 2048
    $region41: #{fused_mlp_forward.1} parent=1 // pred_fallthru
      _
    %v74 = vld [vmem:[%s0] sm:$0xff]
    %v75 = vld [vmem:[#allocation2] sm:$0xff]
    %v76 = vld [vmem:[#allocation2 + $0x8] sm:$0xff]
    %v77 = vld [vmem:[#allocation2 + $0x10] sm:$0xff]
    %v78 = vld [vmem:[#allocation2 + $0x18] sm:$0xff]
    %v79 = vld [vmem:[#allocation2 + $0x20] sm:$0xff]
    %v80 = vld [vmem:[#allocation2 + $0x28] sm:$0xff]
    %v81 = vld [vmem:[#allocation2 + $0x30] sm:$0xff]
    %v82 = vld [vmem:[#allocation2 + $0x38] sm:$0xff]
    %v83 = vld [vmem:[#allocation2 + $0x40] sm:$0xff]
    %v84 = vld [vmem:[#allocation2 + $0x48] sm:$0xff]
    %v85 = vld [vmem:[#allocation2 + $0x50] sm:$0xff]
    %v86 = vld [vmem:[#allocation2 + $0x58] sm:$0xff]
    %v87 = vld [vmem:[#allocation2 + $0x60] sm:$0xff]
    %v88 = vld [vmem:[#allocation2 + $0x68] sm:$0xff]
    %v89 = vld [vmem:[#allocation2 + $0x70] sm:$0xff]
    %v90 = vld [vmem:[#allocation2 + $0x78] sm:$0xff]
    %v91 = vld [vmem:[%s2] sm:$0x1]
    %v93 = vperm.slane %v91, 0
    %95 = vmatpush.msra.mxu0 %v90
    %96 = vmatpush.msra.mxu0 %v89
    %97 = vmatpush.msra.mxu0 %v88
    %98 = vmatpush.msra.mxu0 %v87
    %99 = vmatpush.msra.mxu0 %v86
    %100 = vmatpush.msra.mxu0 %v85
    %101 = vmatpush.msra.mxu0 %v84
    %102 = vmatpush.msra.mxu0 %v83
    %103 = vmatpush.msra.mxu0 %v82
    %104 = vmatpush.msra.mxu0 %v81
    %105 = vmatpush.msra.mxu0 %v80
    %106 = vmatpush.msra.mxu0 %v79
    %107 = vmatpush.msra.mxu0 %v78
    %108 = vmatpush.msra.mxu0 %v77
    %109 = vmatpush.msra.mxu0 %v76
    %110 = vmatpush.msra.mxu0 %v75
    %111 = vmatmul.f32.gmra.mxu0 %v74
    %v112 = vpop.f32.mrf.mxu0
    %v113 = vadd.f32 %v93, %v112
    %114 = vdwg.mxu0
    %v115 = vmax.f32 %v113, 0.0
    %v116 = vld [vmem:[#allocation5] sm:$0xff]
    %v117 = vld [vmem:[#allocation5 + $0x8] sm:$0xff]
    %v118 = vld [vmem:[#allocation5 + $0x10] sm:$0xff]
    %v119 = vld [vmem:[#allocation5 + $0x18] sm:$0xff]
    %v120 = vld [vmem:[#allocation5 + $0x20] sm:$0xff]
    %v121 = vld [vmem:[#allocation5 + $0x28] sm:$0xff]
    %v122 = vld [vmem:[#allocation5 + $0x30] sm:$0xff]
    %v123 = vld [vmem:[#allocation5 + $0x38] sm:$0xff]
    %v124 = vld [vmem:[#allocation5 + $0x40] sm:$0xff]
    %v125 = vld [vmem:[#allocation5 + $0x48] sm:$0xff]
    %v126 = vld [vmem:[#allocation5 + $0x50] sm:$0xff]
    %v127 = vld [vmem:[#allocation5 + $0x58] sm:$0xff]
    %v128 = vld [vmem:[#allocation5 + $0x60] sm:$0xff]
    %v129 = vld [vmem:[#allocation5 + $0x68] sm:$0xff]
    %v130 = vld [vmem:[#allocation5 + $0x70] sm:$0xff]
    %v131 = vld [vmem:[#allocation5 + $0x78] sm:$0xff]
    %v132 = vld [vmem:[%s4] sm:$0x1]
    %v134 = vperm.slane %v132, 0
    %136 = vmatpush.msra.mxu0 %v131
    %137 = vmatpush.msra.mxu0 %v130
    %138 = vmatpush.msra.mxu0 %v129
    %139 = vmatpush.msra.mxu0 %v128
    %140 = vmatpush.msra.mxu0 %v127
    %141 = vmatpush.msra.mxu0 %v126
    %142 = vmatpush.msra.mxu0 %v125
    %143 = vmatpush.msra.mxu0 %v124
    %144 = vmatpush.msra.mxu0 %v123
    %145 = vmatpush.msra.mxu0 %v122
    %146 = vmatpush.msra.mxu0 %v121
    %147 = vmatpush.msra.mxu0 %v120
    %148 = vmatpush.msra.mxu0 %v119
    %149 = vmatpush.msra.mxu0 %v118
    %150 = vmatpush.msra.mxu0 %v117
    %151 = vmatpush.msra.mxu0 %v116
    %152 = vmatmul.f32.gmra.mxu0 %v115
    %v153 = vpop.f32.mrf.mxu0
    %v154 = vadd.f32 %v134, %v153
    %155 = vdwg.mxu0
    %v156 = vmax.f32 %v154, 0.0
    %v157 = vld [vmem:[#allocation7] sm:$0xff]
    %v158 = vld [vmem:[#allocation7 + $0x8] sm:$0xff]
    %v159 = vld [vmem:[#allocation7 + $0x10] sm:$0xff]
    %v160 = vld [vmem:[#allocation7 + $0x18] sm:$0xff]
    %v161 = vld [vmem:[#allocation7 + $0x20] sm:$0xff]
    %v162 = vld [vmem:[#allocation7 + $0x28] sm:$0xff]
    %v163 = vld [vmem:[#allocation7 + $0x30] sm:$0xff]
    %v164 = vld [vmem:[#allocation7 + $0x38] sm:$0xff]
    %v165 = vld [vmem:[#allocation7 + $0x40] sm:$0xff]
    %v166 = vld [vmem:[#allocation7 + $0x48] sm:$0xff]
    %v167 = vld [vmem:[#allocation7 + $0x50] sm:$0xff]
    %v168 = vld [vmem:[#allocation7 + $0x58] sm:$0xff]
    %v169 = vld [vmem:[#allocation7 + $0x60] sm:$0xff]
    %v170 = vld [vmem:[#allocation7 + $0x68] sm:$0xff]
    %v171 = vld [vmem:[#allocation7 + $0x70] sm:$0xff]
    %v172 = vld [vmem:[#allocation7 + $0x78] sm:$0xff]
    %v173 = vld [vmem:[%s6] sm:$0x1]
    %v175 = vperm.slane %v173, 0
    %177 = vmatpush.msra.mxu0 %v172
    %178 = vmatpush.msra.mxu0 %v171
    %179 = vmatpush.msra.mxu0 %v170
    %180 = vmatpush.msra.mxu0 %v169
    %181 = vmatpush.msra.mxu0 %v168
    %182 = vmatpush.msra.mxu0 %v167
    %183 = vmatpush.msra.mxu0 %v166
    %184 = vmatpush.msra.mxu0 %v165
    %185 = vmatpush.msra.mxu0 %v164
    %186 = vmatpush.msra.mxu0 %v163
    %187 = vmatpush.msra.mxu0 %v162
    %188 = vmatpush.msra.mxu0 %v161
    %189 = vmatpush.msra.mxu0 %v160
    %190 = vmatpush.msra.mxu0 %v159
    %191 = vmatpush.msra.mxu0 %v158
    %192 = vmatpush.msra.mxu0 %v157
    %193 = vmatmul.f32.gmra.mxu0 %v156
    %v194 = vpop.f32.mrf.mxu0
    %v195 = vadd.f32 %v175, %v194
    %196 = vdwg.mxu0
    %197 = vst [vmem:[#allocation8] sm:$0xff] %v195
    // Predicated region
    $region42: #{fused_mlp_forward.1} parent=1 // pred_check
      _
    $region43: #{fused_mlp_forward.1} parent=1 // pred_check_branch
      %199 = sbr.rel (0) target = $region45
    $region44: #{fused_mlp_forward.1} parent=1 // pred_region
      %201 = vsyncadd [#allocation4], 0
      %s203 = sshll.u32 [#allocation8], 4
      %s204 = int_to_ptr.vmem [resolvable:$true] %s203
      %s205 = sshll.u32 %s7, 4
      %s206 = int_to_ptr.hbm [resolvable:$true] %s205
      %208 = dma.vmem_to_hbm [thread:$0]  %s204, 128, %s206, [#allocation4]
    $region45: #{fused_mlp_forward.1} parent=1 // pred_fallthru
      _
    // Predicated region
    $region46: #{fused_mlp_forward.1} parent=1 // pred_check
      _
    $region47: #{fused_mlp_forward.1} parent=1 // pred_check_branch
      %210 = sbr.rel (0) target = $region49
    $region48: #{fused_mlp_forward.1} parent=1 // pred_region
      %212 = dma.done [#allocation4], 128
    $region49: #{fused_mlp_forward.1} parent=1 // pred_fallthru
      _
    %213 = vsyncpa [#allocation3], 1
    %214 = vsyncpa [#allocation6], 1
    %215 = vsyncpa [#allocation4], 1

</llo_original>
